<compile_context>
chip_gen: v5e
topology: v5e:2x2
jax: 0.10.0
libtpu: 0.0.40
codegen_flags: <defaults>
</compile_context>

<pallas_src>
import functools

import jax
import jax.numpy as jnp
from jax.experimental import pallas as pl
from jax.experimental.pallas import tpu as pltpu

LN_EPS = 1e-5                     # torch.nn.LayerNorm default eps
_MIB = 1024 * 1024


# --------------------------------------------------------------------------
# Kernel
# --------------------------------------------------------------------------
def _patch_merge_kernel(x_ref, w_ref, b_ref, o_ref, *, matmul_dtype):
    # x_ref : (R, 2, W2b, 2C)   merged 2x2 neighborhoods; axis 1 = row parity.
    #                           slab A (axis1=0) -> channels [x0 | x2]
    #                           slab B (axis1=1) -> channels [x1 | x3]
    # w_ref : (4C, Cout)        LN-gamma-folded reduction weight, rows in the
    #                           kernel slab order [x0, x2, x1, x3].
    # b_ref : (1, Cout)         beta @ W   (permutation invariant)
    # o_ref : (R, W2b, Cout)
    #
    # Tail-block / W2-padding rows may contain garbage; their LN / matmul
    # results are discarded by the masked partial-block store, and no
    # reduction crosses the token axis, so garbage cannot leak into valid
    # outputs.  (Keep it that way if this kernel is ever refactored.)
    R, _, W2b, C2 = x_ref.shape
    n_tok = R * W2b
    inv_feat = 1.0 / (2 * C2)                       # 1 / (4C)

    xa = x_ref[:, 0, :, :].reshape(n_tok, C2).astype(jnp.float32)  # [x0 | x2]
    xb = x_ref[:, 1, :, :].reshape(n_tok, C2).astype(jnp.float32)  # [x1 | x3]

    # Two-pass LayerNorm statistics over the 4C channels of each merged token
    # (two-pass keeps var >= 0; data is VMEM-resident so the cost is tiny).
    mean = (jnp.sum(xa, axis=-1, keepdims=True)
            + jnp.sum(xb, axis=-1, keepdims=True)) * inv_feat
    xac = xa - mean
    xbc = xb - mean
    var = (jnp.sum(xac * xac, axis=-1, keepdims=True)
           + jnp.sum(xbc * xbc, axis=-1, keepdims=True)) * inv_feat
    inv = jax.lax.rsqrt(var + LN_EPS)

    za = (xac * inv).astype(matmul_dtype)
    zb = (xbc * inv).astype(matmul_dtype)

    wa = w_ref[0:C2, :].astype(matmul_dtype)        # rows for [x0 | x2]
    wb = w_ref[C2:2 * C2, :].astype(matmul_dtype)   # rows for [x1 | x3]

    out = (jnp.dot(za, wa, preferred_element_type=jnp.float32)
           + jnp.dot(zb, wb, preferred_element_type=jnp.float32))
    out = out + b_ref[...].astype(jnp.float32)      # (1, Cout) broadcasts

    # NOTE: for very small C (2C < 128 lanes) the output store is masked and
    # slow; real Swin/VMamba dims (C >= 96) are lane-dense.
    o_ref[...] = out.reshape(R, W2b, -1).astype(o_ref.dtype)


# --------------------------------------------------------------------------
# Parameter prep (call ONCE, outside the step / at module init)
# --------------------------------------------------------------------------
def fold_patch_merging_params(gamma, beta, weight, weight_dtype=None):
    """Fold LayerNorm affine into the reduction weight.

    gamma, beta: (4C,) LayerNorm affine.  weight: (4C, 2C), stored (in, out)
    i.e. the transpose of torch's nn.Linear.weight.

    Returns:
      w_fold: (4C, 2C) rows reordered to the kernel slab order
              [x0, x2, x1, x3] and pre-scaled by gamma (static slices only).
      bias:   (1, 2C)  = beta @ weight (permutation invariant).
    """
    four_c = gamma.shape[0]
    assert weight.shape[0] == four_c and four_c % 4 == 0
    C = four_c // 4
    gw = weight * gamma[:, None].astype(weight.dtype)
    w_fold = jnp.concatenate(
        [gw[0:C], gw[2 * C:3 * C], gw[C:2 * C], gw[3 * C:4 * C]], axis=0)
    if weight_dtype is not None:
        w_fold = w_fold.astype(weight_dtype)
    bias = (beta.astype(jnp.float32) @ weight.astype(jnp.float32))[None, :]
    return w_fold, bias


# --------------------------------------------------------------------------
# Generation-aware sizing
# --------------------------------------------------------------------------
def _tpu_budgets():
    """(vmem_limit_bytes, tile_budget_bytes, max_tokens_per_tile, two_tc)."""
    kind = ""
    try:
        kind = (jax.devices()[0].device_kind or "").lower()
    except Exception:
        pass
    vmem = None
    try:
        info = pltpu.get_tpu_info()
        v = int(getattr(info, "vmem_capacity_bytes", 0) or 0)
        vmem = v if v > 0 else None
    except Exception:
        vmem = None
    if vmem is None:
        # Unknown: be conservative (v7x has only 64 MiB per TensorCore).
        vmem = 64 * _MIB if ("v7" in kind or not kind) else 128 * _MIB
    two_tc = ("v7" in kind) or vmem <= 64 * _MIB
    if vmem <= 64 * _MIB:
        # v7x-class: leave headroom for compiler-internal scratch.
        return 40 * _MIB, 22 * _MIB, 2048, two_tc
    # v5e / v6e: 128 MiB physical, single TensorCore -> go big (v5e's scoped
    # default is only 16 MiB, so raising vmem_limit_bytes explicitly matters).
    return 96 * _MIB, 64 * _MIB, 8192, two_tc


def _choose_row_tile(P, W2b, C2, Cout, x_isz, w_isz,
                     tile_budget, max_tokens, two_tc):
    """Pick row-pairs R per grid step and the resulting grid length."""
    # VMEM per unit of R:
    #   merged input block (2*W2b*C2), double-buffered
    #   output block (W2b*Cout), double-buffered
    #   in-kernel f32 temporaries (xa/xb, centered, normalized, f32 result)
    per_r = (2 * (2 * W2b * C2) * x_isz
             + 2 * (W2b * Cout) * x_isz
             + 6 * W2b * C2 * 4
             + 2 * W2b * Cout * 4)
    fixed = (2 * C2) * Cout * w_isz + Cout * 4       # single-buffered W + bias
    r_vmem = max(1, (tile_budget - fixed) // per_r)
    r_tok = max(1, max_tokens // max(1, W2b))
    R = int(max(1, min(P, r_vmem, r_tok)))

    n = pl.cdiv(P, R)
    if two_tc and P > 1:
        # v7x: the "parallel" grid axis is sharded across 2 TensorCores ->
        # keep an even, balanced step count so neither core idles on a tail.
        n = max(2, n)
        if n % 2:
            n += 1
        R = pl.cdiv(P, n)
    else:
        # Single TC (v5e/v6e): no benefit from splitting a fit-in-one-tile
        # problem; just balance the tail block.
        R = pl.cdiv(P, n)
    return int(R), int(pl.cdiv(P, R))


# --------------------------------------------------------------------------
# Forward wrapper
# --------------------------------------------------------------------------
def patch_merging_forward(x, w_fold, bias, input_resolution, matmul_dtype=None):
    """x: (B, H*W, C).  w_fold/bias from fold_patch_merging_params.

    Returns (B, H/2*W/2, 2C), matching PatchMerging.forward.
    """
    H, W = input_resolution
    B, L, C = x.shape
    assert L == H * W, "input feature has wrong size"
    assert H % 2 == 0 and W % 2 == 0, f"x size ({H}*{W}) are not even."
    assert w_fold.shape[0] == 4 * C and bias.shape == (1, w_fold.shape[1])

    P = B * (H // 2)              # number of 2-row "row pairs"
    W2 = W // 2
    W2b = ((W2 + 7) // 8) * 8     # sublane-aligned block width (free flatten)
    C2 = 2 * C                    # channels per slab
    Cout = w_fold.shape[1]        # = 2C
    M = P * W2                    # total output tokens

    if matmul_dtype is None:
        # Large-C stages are pushed toward the compute roofline: use bf16 MXU
        # (f32 accumulation).  Small-C stages are HBM-bound -> keep f32.
        matmul_dtype = (jnp.bfloat16
                        if (C >= 192 or x.dtype == jnp.bfloat16)
                        else jnp.float32)

    # Free view (pure reshape of a contiguous array, no HBM traffic):
    #   (B, H*W, C) -> (B*H/2, 2, W/2, 2C); axis 1 is the even/odd row bit,
    #   the 2C axis packs the even/odd column pair.
    xr = x.reshape(P, 2, W2, C2)

    vmem_limit, tile_budget, max_tokens, two_tc = _tpu_budgets()
    R, grid_n = _choose_row_tile(P, W2b, C2, Cout, x.dtype.itemsize,
                                 w_fold.dtype.itemsize,
                                 tile_budget, max_tokens, two_tc)

    kernel = functools.partial(_patch_merge_kernel, matmul_dtype=matmul_dtype)
    cost = pl.CostEstimate(
        flops=2 * M * (4 * C) * Cout + 8 * M * 4 * C,
        transcendentals=M,
        bytes_accessed=(M * 4 * C + M * Cout) * x.dtype.itemsize
        + (4 * C) * Cout * w_fold.dtype.itemsize,
    )

    out = pl.pallas_call(
        kernel,
        out_shape=jax.ShapeDtypeStruct((P, W2, Cout), x.dtype),
        grid_spec=pltpu.PrefetchScalarGridSpec(
            num_scalar_prefetch=0,
            grid=(grid_n,),
            in_specs=[
                # One contiguous DMA per step: both row slabs of R row-pairs.
                # (Bump to pl.Buffered(3) only if xprof shows exposed DMA.)
                pl.BlockSpec((R, 2, W2b, C2), lambda i: (i, 0, 0, 0)),
                # Grid-invariant operands: single-buffered (saves VMEM).
                pl.BlockSpec((2 * C2, Cout), lambda i: (0, 0),
                             pipeline_mode=pl.Buffered(1)),
                pl.BlockSpec((1, Cout), lambda i: (0, 0),
                             pipeline_mode=pl.Buffered(1)),
            ],
            out_specs=pl.BlockSpec((R, W2b, Cout), lambda i: (i, 0, 0)),
        ),
        compiler_params=pltpu.CompilerParams(
            dimension_semantics=("parallel",),
            vmem_limit_bytes=vmem_limit,
        ),
        cost_estimate=cost,
    )(xr, w_fold, bias)

    # (B*H/2, W/2, 2C) -> (B, H/2*W/2, 2C): free reshape.
    return out.reshape(B, (H // 2) * (W // 2), Cout)


def patch_merging_forward_raw(x, gamma, beta, weight, input_resolution,
                              matmul_dtype=None):
    """Convenience path taking raw module params (prefer pre-folding once)."""
    w_fold, bias = fold_patch_merging_params(gamma, beta, weight)
    return patch_merging_forward(x, w_fold, bias, input_resolution, matmul_dtype)


# --------------------------------------------------------------------------
# Pure-JAX reference (mirrors the torch module) for the correctness check
# --------------------------------------------------------------------------
def _reference_forward(x, gamma, beta, weight, input_resolution):
    H, W = input_resolution
    B, L, C = x.shape
    xg = x.reshape(B, H, W, C)
    x0 = xg[:, 0::2, 0::2, :]
    x1 = xg[:, 1::2, 0::2, :]
    x2 = xg[:, 0::2, 1::2, :]
    x3 = xg[:, 1::2, 1::2, :]
    xm = jnp.concatenate([x0, x1, x2, x3], axis=-1).reshape(B, -1, 4 * C)
    mean = jnp.mean(xm, axis=-1, keepdims=True)
    var = jnp.mean((xm - mean) ** 2, axis=-1, keepdims=True)
    xn = (xm - mean) / jnp.sqrt(var + LN_EPS) * gamma + beta
    return xn @ weight


if __name__ == "__main__":
    # Small shapes consistent with the module: B=2, dim(C)=4, H=W=16.
    B, C, H, W = 2, 4, 16, 16
    key = jax.random.PRNGKey(0)
    kx, kw, kg, kb = jax.random.split(key, 4)

    x = jax.random.normal(kx, (B, H * W, C), dtype=jnp.float32)

    # Synthetic deterministic params:
    #   nn.Linear(4C, 2C, bias=False) -> torch weight (out=2C, in=4C); stored (in, out).
    #   nn.LayerNorm(4C) -> non-trivial gamma/beta so the slab permutation is tested.
    w_torch_layout = 0.02 * jax.random.normal(kw, (2 * C, 4 * C), dtype=jnp.float32)
    weight = w_torch_layout.T                                    # (4C, 2C)
    gamma = 1.0 + 0.1 * jax.random.normal(kg, (4 * C,), dtype=jnp.float32)
    beta = 0.05 * jax.random.normal(kb, (4 * C,), dtype=jnp.float32)

    # One-time parameter prep (no per-call gathers; LN affine folded into W).
    w_fold, bias = fold_patch_merging_params(gamma, beta, weight)

    out = patch_merging_forward(x, w_fold, bias, (H, W))
    out = jax.block_until_ready(out)

    ref = _reference_forward(x, gamma, beta, weight, (H, W))
    assert out.shape == (B, (H // 2) * (W // 2), 2 * C), out.shape
    assert jnp.allclose(out, ref, atol=1e-4, rtol=1e-4), \
        float(jnp.max(jnp.abs(out - ref)))

    print("KERNEL_OK")
</pallas_src>

<mosaic_0001>
module attributes {stable_mosaic.version = 11 : i64} {
  func.func @_patch_merge_kernel(%arg0: i32, %arg1: memref<16x2x8x8xf32, #tpu.memory_space<vmem>>, %arg2: memref<16x8xf32, #tpu.memory_space<vmem>>, %arg3: memref<1x8xf32, #tpu.memory_space<vmem>>, %arg4: memref<16x8x8xf32, #tpu.memory_space<vmem>>) attributes {dimension_semantics = [#tpu.dimension_semantics<parallel>], iteration_bounds = array<i64: 1>, scalar_prefetch = 0 : i64, scratch_operands = 0 : i64, tpu.core_type = #tpu.core_type<tc>, window_params = [{transform_indices = @transform_0, window_bounds = array<i64: 16, 2, 8, 8>}, {pipeline_mode = #tpu.pipeline_mode<synchronous>, transform_indices = @transform_1, window_bounds = array<i64: 16, 8>}, {pipeline_mode = #tpu.pipeline_mode<synchronous>, transform_indices = @transform_2, window_bounds = array<i64: 1, 8>}, {transform_indices = @transform_3, window_bounds = array<i64: 16, 8, 8>}]} {
    %c0 = arith.constant 0 : index
    %c0_0 = arith.constant 0 : index
    %c0_1 = arith.constant 0 : index
    %c0_2 = arith.constant 0 : index
    %0 = vector.load %arg1[%c0, %c0_0, %c0_1, %c0_2] : memref<16x2x8x8xf32, #tpu.memory_space<vmem>>, vector<16x1x8x8xf32>
    %1 = vector.shape_cast %0 : vector<16x1x8x8xf32> to vector<16x8x8xf32>
    %2 = vector.shape_cast %1 : vector<16x8x8xf32> to vector<128x8xf32>
    %c0_3 = arith.constant 0 : index
    %c1 = arith.constant 1 : index
    %c0_4 = arith.constant 0 : index
    %c0_5 = arith.constant 0 : index
    %3 = vector.load %arg1[%c0_3, %c1, %c0_4, %c0_5] : memref<16x2x8x8xf32, #tpu.memory_space<vmem>>, vector<16x1x8x8xf32>
    %4 = vector.shape_cast %3 : vector<16x1x8x8xf32> to vector<16x8x8xf32>
    %5 = vector.shape_cast %4 : vector<16x8x8xf32> to vector<128x8xf32>
    %cst = arith.constant dense<0.000000e+00> : vector<128xf32>
    %6 = vector.multi_reduction <add>, %2, %cst [1] : vector<128x8xf32> to vector<128xf32>
    %7 = vector.shape_cast %6 : vector<128xf32> to vector<128x1xf32>
    %cst_6 = arith.constant dense<0.000000e+00> : vector<128xf32>
    %8 = vector.multi_reduction <add>, %5, %cst_6 [1] : vector<128x8xf32> to vector<128xf32>
    %9 = vector.shape_cast %8 : vector<128xf32> to vector<128x1xf32>
    %10 = arith.addf %7, %9 : vector<128x1xf32>
    %cst_7 = arith.constant 6.250000e-02 : f32
    %11 = vector.broadcast %cst_7 : f32 to vector<128x1xf32>
    %12 = arith.mulf %10, %11 : vector<128x1xf32>
    %13 = vector.broadcast %12 : vector<128x1xf32> to vector<128x8xf32>
    %14 = arith.subf %2, %13 : vector<128x8xf32>
    %15 = vector.broadcast %12 : vector<128x1xf32> to vector<128x8xf32>
    %16 = arith.subf %5, %15 : vector<128x8xf32>
    %17 = arith.mulf %14, %14 : vector<128x8xf32>
    %cst_8 = arith.constant dense<0.000000e+00> : vector<128xf32>
    %18 = vector.multi_reduction <add>, %17, %cst_8 [1] : vector<128x8xf32> to vector<128xf32>
    %19 = vector.shape_cast %18 : vector<128xf32> to vector<128x1xf32>
    %20 = arith.mulf %16, %16 : vector<128x8xf32>
    %cst_9 = arith.constant dense<0.000000e+00> : vector<128xf32>
    %21 = vector.multi_reduction <add>, %20, %cst_9 [1] : vector<128x8xf32> to vector<128xf32>
    %22 = vector.shape_cast %21 : vector<128xf32> to vector<128x1xf32>
    %23 = arith.addf %19, %22 : vector<128x1xf32>
    %cst_10 = arith.constant 6.250000e-02 : f32
    %24 = vector.broadcast %cst_10 : f32 to vector<128x1xf32>
    %25 = arith.mulf %23, %24 : vector<128x1xf32>
    %cst_11 = arith.constant 9.99999974E-6 : f32
    %26 = vector.broadcast %cst_11 : f32 to vector<128x1xf32>
    %27 = arith.addf %25, %26 : vector<128x1xf32>
    %28 = math.rsqrt %27 : vector<128x1xf32>
    %29 = vector.broadcast %28 : vector<128x1xf32> to vector<128x8xf32>
    %30 = arith.mulf %14, %29 : vector<128x8xf32>
    %31 = vector.broadcast %28 : vector<128x1xf32> to vector<128x8xf32>
    %32 = arith.mulf %16, %31 : vector<128x8xf32>
    %c0_12 = arith.constant 0 : index
    %c0_13 = arith.constant 0 : index
    %33 = vector.load %arg2[%c0_12, %c0_13] : memref<16x8xf32, #tpu.memory_space<vmem>>, vector<8x8xf32>
    %c8 = arith.constant 8 : index
    %c0_14 = arith.constant 0 : index
    %34 = vector.load %arg2[%c8, %c0_14] : memref<16x8xf32, #tpu.memory_space<vmem>>, vector<8x8xf32>
    %cst_15 = arith.constant dense<0.000000e+00> : vector<128x8xf32>
    %35 = tpu.matmul %30, %33, %cst_15 {dimension_numbers = #tpu.dot_dimension_numbers<[1], [0], [0], [1], [0, 0, 1, 1], [], []>} : vector<128x8xf32>, vector<8x8xf32>, vector<128x8xf32> -> vector<128x8xf32>
    %cst_16 = arith.constant dense<0.000000e+00> : vector<128x8xf32>
    %36 = tpu.matmul %32, %34, %cst_16 {dimension_numbers = #tpu.dot_dimension_numbers<[1], [0], [0], [1], [0, 0, 1, 1], [], []>} : vector<128x8xf32>, vector<8x8xf32>, vector<128x8xf32> -> vector<128x8xf32>
    %37 = arith.addf %35, %36 : vector<128x8xf32>
    %c0_17 = arith.constant 0 : index
    %c0_18 = arith.constant 0 : index
    %38 = vector.load %arg3[%c0_17, %c0_18] : memref<1x8xf32, #tpu.memory_space<vmem>>, vector<1x8xf32>
    %39 = vector.broadcast %38 : vector<1x8xf32> to vector<128x8xf32>
    %40 = arith.addf %37, %39 : vector<128x8xf32>
    %41 = vector.shape_cast %40 : vector<128x8xf32> to vector<16x8x8xf32>
    %c0_19 = arith.constant 0 : index
    %c0_20 = arith.constant 0 : index
    %c0_21 = arith.constant 0 : index
    %42 = vector.load %arg4[%c0_19, %c0_20, %c0_21] : memref<16x8x8xf32, #tpu.memory_space<vmem>>, vector<16x8x8xf32>
    tpu.vector_store %arg4[%c0_19, %c0_20, %c0_21], %41 {strides = array<i32>} : memref<16x8x8xf32, #tpu.memory_space<vmem>>, vector<16x8x8xf32>,
    return
  }
  func.func @transform_0(%arg0: i32) -> (i32, i32, i32, i32) {
    %c0_i32 = arith.constant 0 : i32
    %c0_i32_0 = arith.constant 0 : i32
    %c0_i32_1 = arith.constant 0 : i32
    %c0_i32_2 = arith.constant 0 : i32
    return %arg0, %c0_i32, %c0_i32_0, %c0_i32_1 : i32, i32, i32, i32
  }
  func.func @transform_1(%arg0: i32) -> (i32, i32) {
    %c0_i32 = arith.constant 0 : i32
    %c0_i32_0 = arith.constant 0 : i32
    %c0_i32_1 = arith.constant 0 : i32
    return %c0_i32, %c0_i32_0 : i32, i32
  }
  func.func @transform_2(%arg0: i32) -> (i32, i32) {
    %c0_i32 = arith.constant 0 : i32
    %c0_i32_0 = arith.constant 0 : i32
    %c0_i32_1 = arith.constant 0 : i32
    return %c0_i32, %c0_i32_0 : i32, i32
  }
  func.func @transform_3(%arg0: i32) -> (i32, i32, i32) {
    %c0_i32 = arith.constant 0 : i32
    %c0_i32_0 = arith.constant 0 : i32
    %c0_i32_1 = arith.constant 0 : i32
    return %arg0, %c0_i32, %c0_i32_0 : i32, i32, i32
  }
}

</mosaic_0001>

<llo_original>
// kernel: tpu_custom_call.1
$region0: #{tpu_custom_call.1}
  #allocation0 [shape = 'u32[]', space=smem, size = 0x4, offset = 0x4, fixed_abs, tag = 'smem constant byte address 0x4 - core index']
  #allocation1 [shape = 'u32[72,128]{1,0:T(1,128)}', space=vmem, size = 0x9000, scoped, tag = 'internal scratch']
  %s0 = inlined_call_operand.vmem [shape: f32[16,2,8,8], index: 0, kind: input, shape index: {}]
  %s1 = inlined_call_operand.vmem [shape: f32[16,8], index: 1, kind: input, shape index: {}]
  %s2 = inlined_call_operand.vmem [shape: f32[1,8], index: 2, kind: input, shape index: {}]
  %s3 = inlined_call_operand.vmem [shape: f32[16,8,8], index: 3, kind: output, shape index: {}]
  %s4 = sld [smem:[#allocation0]]
  $region22: #{tpu_custom_call.1} parent=0
    _
  %s6 = ssub.s32 1, %s4
  %s7 = scalar_select 0, %s6, %s4
  // Predicated region
  $region2: #{tpu_custom_call.1} parent=0 // pred_check
    _
  $region3: #{tpu_custom_call.1} parent=0 // pred_check_branch
    %9 = sbr.rel (0) target = $region5
  $region4: #{tpu_custom_call.1} parent=0 // pred_region
    _
  $region5: #{tpu_custom_call.1} parent=0 // pred_fallthru
    _
  // Predicated region
  $region6: #{tpu_custom_call.1} parent=0 // pred_check
    _
  $region7: #{tpu_custom_call.1} parent=0 // pred_check_branch
    %11 = sbr.rel (0) target = $region9
  $region8: #{tpu_custom_call.1} parent=0 // pred_region
    _
  $region9: #{tpu_custom_call.1} parent=0 // pred_fallthru
    _
  // Predicated region
  $region10: #{tpu_custom_call.1} parent=0 // pred_check
    _
  $region11: #{tpu_custom_call.1} parent=0 // pred_check_branch
    %13 = sbr.rel (0) target = $region13
  $region12: #{tpu_custom_call.1} parent=0 // pred_region
    _
  $region13: #{tpu_custom_call.1} parent=0 // pred_fallthru
    _
  %v14 = vld [vmem:[%s0] sm:$0xff]
  %v15 = vld [vmem:[%s0 + $0x10] sm:$0xff]
  %v16 = vld [vmem:[%s0 + $0x20] sm:$0xff]
  %v17 = vld [vmem:[%s0 + $0x30] sm:$0xff]
  %v18 = vld [vmem:[%s0 + $0x40] sm:$0xff]
  %v19 = vld [vmem:[%s0 + $0x50] sm:$0xff]
  %v20 = vld [vmem:[%s0 + $0x60] sm:$0xff]
  %v21 = vld [vmem:[%s0 + $0x70] sm:$0xff]
  %v22 = vld [vmem:[%s0 + $0x80] sm:$0xff]
  %v23 = vld [vmem:[%s0 + $0x90] sm:$0xff]
  %v24 = vld [vmem:[%s0 + $0xa0] sm:$0xff]
  %v25 = vld [vmem:[%s0 + $0xb0] sm:$0xff]
  %v26 = vld [vmem:[%s0 + $0xc0] sm:$0xff]
  %v27 = vld [vmem:[%s0 + $0xd0] sm:$0xff]
  %v28 = vld [vmem:[%s0 + $0xe0] sm:$0xff]
  %v29 = vld [vmem:[%s0 + $0xf0] sm:$0xff]
  %s30 = scalar_lea.vmem %s0, 8
  %v31 = vld [vmem:[%s30] sm:$0xff]
  %v32 = vld [vmem:[%s30 + $0x10] sm:$0xff]
  %v33 = vld [vmem:[%s30 + $0x20] sm:$0xff]
  %v34 = vld [vmem:[%s30 + $0x30] sm:$0xff]
  %v35 = vld [vmem:[%s30 + $0x40] sm:$0xff]
  %v36 = vld [vmem:[%s30 + $0x50] sm:$0xff]
  %v37 = vld [vmem:[%s30 + $0x60] sm:$0xff]
  %v38 = vld [vmem:[%s30 + $0x70] sm:$0xff]
  %v39 = vld [vmem:[%s30 + $0x80] sm:$0xff]
  %v40 = vld [vmem:[%s30 + $0x90] sm:$0xff]
  %v41 = vld [vmem:[%s30 + $0xa0] sm:$0xff]
  %v42 = vld [vmem:[%s30 + $0xb0] sm:$0xff]
  %v43 = vld [vmem:[%s30 + $0xc0] sm:$0xff]
  %v44 = vld [vmem:[%s30 + $0xd0] sm:$0xff]
  %v45 = vld [vmem:[%s30 + $0xe0] sm:$0xff]
  %v46 = vld [vmem:[%s30 + $0xf0] sm:$0xff]
  %vm47 = vcmask 64512
  %v48 = vsel %vm47, %v14, 0.0
  %49 = vadd.xlane.f32.xlu0 %v48
  %v50 = vpop.xlane.xlu0 %49
  %v51 = vsel %vm47, %v15, 0.0
  %52 = vadd.xlane.f32.xlu0 %v51
  %v53 = vpop.xlane.xlu0 %52
  %v54 = vsel %vm47, %v16, 0.0
  %55 = vadd.xlane.f32.xlu0 %v54
  %v56 = vpop.xlane.xlu0 %55
  %v57 = vsel %vm47, %v17, 0.0
  %58 = vadd.xlane.f32.xlu0 %v57
  %v59 = vpop.xlane.xlu0 %58
  %v60 = vsel %vm47, %v18, 0.0
  %61 = vadd.xlane.f32.xlu0 %v60
  %v62 = vpop.xlane.xlu0 %61
  %v63 = vsel %vm47, %v19, 0.0
  %64 = vadd.xlane.f32.xlu0 %v63
  %v65 = vpop.xlane.xlu0 %64
  %v66 = vsel %vm47, %v20, 0.0
  %67 = vadd.xlane.f32.xlu0 %v66
  %v68 = vpop.xlane.xlu0 %67
  %v69 = vsel %vm47, %v21, 0.0
  %70 = vadd.xlane.f32.xlu0 %v69
  %v71 = vpop.xlane.xlu0 %70
  %v72 = vsel %vm47, %v22, 0.0
  %73 = vadd.xlane.f32.xlu0 %v72
  %v74 = vpop.xlane.xlu0 %73
  %v75 = vsel %vm47, %v23, 0.0
  %76 = vadd.xlane.f32.xlu0 %v75
  %v77 = vpop.xlane.xlu0 %76
  %v78 = vsel %vm47, %v24, 0.0
  %79 = vadd.xlane.f32.xlu0 %v78
  %v80 = vpop.xlane.xlu0 %79
  %v81 = vsel %vm47, %v25, 0.0
  %82 = vadd.xlane.f32.xlu0 %v81
  %v83 = vpop.xlane.xlu0 %82
  %v84 = vsel %vm47, %v26, 0.0
  %85 = vadd.xlane.f32.xlu0 %v84
  %v86 = vpop.xlane.xlu0 %85
  %v87 = vsel %vm47, %v27, 0.0
  %88 = vadd.xlane.f32.xlu0 %v87
  %v89 = vpop.xlane.xlu0 %88
  %v90 = vsel %vm47, %v28, 0.0
  %91 = vadd.xlane.f32.xlu0 %v90
  %v92 = vpop.xlane.xlu0 %91
  %v93 = vsel %vm47, %v29, 0.0
  %94 = vadd.xlane.f32.xlu0 %v93
  %v95 = vpop.xlane.xlu0 %94
  %v96 = vsel %vm47, %v31, 0.0
  %97 = vadd.xlane.f32.xlu0 %v96
  %v98 = vpop.xlane.xlu0 %97
  %v99 = vsel %vm47, %v32, 0.0
  %100 = vadd.xlane.f32.xlu0 %v99
  %v101 = vpop.xlane.xlu0 %100
  %v102 = vsel %vm47, %v33, 0.0
  %103 = vadd.xlane.f32.xlu0 %v102
  %v104 = vpop.xlane.xlu0 %103
  %v105 = vsel %vm47, %v34, 0.0
  %106 = vadd.xlane.f32.xlu0 %v105
  %v107 = vpop.xlane.xlu0 %106
  %v108 = vsel %vm47, %v35, 0.0
  %109 = vadd.xlane.f32.xlu0 %v108
  %v110 = vpop.xlane.xlu0 %109
  %v111 = vsel %vm47, %v36, 0.0
  %112 = vadd.xlane.f32.xlu0 %v111
  %v113 = vpop.xlane.xlu0 %112
  %v114 = vsel %vm47, %v37, 0.0
  %115 = vadd.xlane.f32.xlu0 %v114
  %v116 = vpop.xlane.xlu0 %115
  %v117 = vsel %vm47, %v38, 0.0
  %118 = vadd.xlane.f32.xlu0 %v117
  %v119 = vpop.xlane.xlu0 %118
  %v120 = vsel %vm47, %v39, 0.0
  %121 = vadd.xlane.f32.xlu0 %v120
  %v122 = vpop.xlane.xlu0 %121
  %v123 = vsel %vm47, %v40, 0.0
  %124 = vadd.xlane.f32.xlu0 %v123
  %v125 = vpop.xlane.xlu0 %124
  %v126 = vsel %vm47, %v41, 0.0
  %127 = vadd.xlane.f32.xlu0 %v126
  %v128 = vpop.xlane.xlu0 %127
  %v129 = vsel %vm47, %v42, 0.0
  %130 = vadd.xlane.f32.xlu0 %v129
  %v131 = vpop.xlane.xlu0 %130
  %v132 = vsel %vm47, %v43, 0.0
  %133 = vadd.xlane.f32.xlu0 %v132
  %v134 = vpop.xlane.xlu0 %133
  %v135 = vsel %vm47, %v44, 0.0
  %136 = vadd.xlane.f32.xlu0 %v135
  %v137 = vpop.xlane.xlu0 %136
  %v138 = vsel %vm47, %v45, 0.0
  %139 = vadd.xlane.f32.xlu0 %v138
  %v140 = vpop.xlane.xlu0 %139
  %v141 = vsel %vm47, %v46, 0.0
  %142 = vadd.xlane.f32.xlu0 %v141
  %v143 = vpop.xlane.xlu0 %142
  %v144 = vadd.f32 %v50, %v98
  %v145 = vadd.f32 %v53, %v101
  %v146 = vadd.f32 %v56, %v104
  %v147 = vadd.f32 %v59, %v107
  %v148 = vadd.f32 %v62, %v110
  %v149 = vadd.f32 %v65, %v113
  %v150 = vadd.f32 %v68, %v116
  %v151 = vadd.f32 %v71, %v119
  %v152 = vadd.f32 %v74, %v122
  %v153 = vadd.f32 %v77, %v125
  %v154 = vadd.f32 %v80, %v128
  %v155 = vadd.f32 %v83, %v131
  %v156 = vadd.f32 %v86, %v134
  %v157 = vadd.f32 %v89, %v137
  %v158 = vadd.f32 %v92, %v140
  %v159 = vadd.f32 %v95, %v143
  %v160 = vmul.f32 %v144, 0.0625
  %v161 = vmul.f32 %v145, 0.0625
  %v162 = vmul.f32 %v146, 0.0625
  %v163 = vmul.f32 %v147, 0.0625
  %v164 = vmul.f32 %v148, 0.0625
  %v165 = vmul.f32 %v149, 0.0625
  %v166 = vmul.f32 %v150, 0.0625
  %v167 = vmul.f32 %v151, 0.0625
  %v168 = vmul.f32 %v152, 0.0625
  %v169 = vmul.f32 %v153, 0.0625
  %v170 = vmul.f32 %v154, 0.0625
  %v171 = vmul.f32 %v155, 0.0625
  %v172 = vmul.f32 %v156, 0.0625
  %v173 = vmul.f32 %v157, 0.0625
  %v174 = vmul.f32 %v158, 0.0625
  %v175 = vmul.f32 %v159, 0.0625
  %v176 = vsub.f32 %v14, %v160
  %v177 = vsub.f32 %v15, %v161
  %v178 = vsub.f32 %v16, %v162
  %v179 = vsub.f32 %v17, %v163
  %v180 = vsub.f32 %v18, %v164
  %v181 = vsub.f32 %v19, %v165
  %v182 = vsub.f32 %v20, %v166
  %v183 = vsub.f32 %v21, %v167
  %v184 = vsub.f32 %v22, %v168
  %v185 = vsub.f32 %v23, %v169
  %v186 = vsub.f32 %v24, %v170
  %v187 = vsub.f32 %v25, %v171
  %v188 = vsub.f32 %v26, %v172
  %v189 = vsub.f32 %v27, %v173
  %v190 = vsub.f32 %v28, %v174
  %v191 = vsub.f32 %v29, %v175
  %v192 = vsub.f32 %v31, %v160
  %v193 = vsub.f32 %v32, %v161
  %v194 = vsub.f32 %v33, %v162
  %v195 = vsub.f32 %v34, %v163
  %v196 = vsub.f32 %v35, %v164
  %v197 = vsub.f32 %v36, %v165
  %v198 = vsub.f32 %v37, %v166
  %v199 = vsub.f32 %v38, %v167
  %v200 = vsub.f32 %v39, %v168
  %v201 = vsub.f32 %v40, %v169
  %v202 = vsub.f32 %v41, %v170
  %v203 = vsub.f32 %v42, %v171
  %v204 = vsub.f32 %v43, %v172
  %v205 = vsub.f32 %v44, %v173
  %v206 = vsub.f32 %v45, %v174
  %v207 = vsub.f32 %v46, %v175
  %v208 = vmul.f32 %v176, %v176
  %v209 = vmul.f32 %v177, %v177
  %v210 = vmul.f32 %v178, %v178
  %v211 = vmul.f32 %v179, %v179
  %v212 = vmul.f32 %v180, %v180
  %v213 = vmul.f32 %v181, %v181
  %v214 = vmul.f32 %v182, %v182
  %v215 = vmul.f32 %v183, %v183
  %v216 = vmul.f32 %v184, %v184
  %v217 = vmul.f32 %v185, %v185
  %v218 = vmul.f32 %v186, %v186
  %v219 = vmul.f32 %v187, %v187
  %v220 = vmul.f32 %v188, %v188
  %v221 = vmul.f32 %v189, %v189
  %v222 = vmul.f32 %v190, %v190
  %v223 = vmul.f32 %v191, %v191
  %v224 = vsel %vm47, %v208, 0.0
  %225 = vadd.xlane.f32.xlu0 %v224
  %v226 = vpop.xlane.xlu0 %225
  %v227 = vsel %vm47, %v209, 0.0
  %228 = vadd.xlane.f32.xlu0 %v227
  %v229 = vpop.xlane.xlu0 %228
  %v230 = vsel %vm47, %v210, 0.0
  %231 = vadd.xlane.f32.xlu0 %v230
  %v232 = vpop.xlane.xlu0 %231
  %v233 = vsel %vm47, %v211, 0.0
  %234 = vadd.xlane.f32.xlu0 %v233
  %v235 = vpop.xlane.xlu0 %234
  %v236 = vsel %vm47, %v212, 0.0
  %237 = vadd.xlane.f32.xlu0 %v236
  %v238 = vpop.xlane.xlu0 %237
  %v239 = vsel %vm47, %v213, 0.0
  %240 = vadd.xlane.f32.xlu0 %v239
  %v241 = vpop.xlane.xlu0 %240
  %v242 = vsel %vm47, %v214, 0.0
  %243 = vadd.xlane.f32.xlu0 %v242
  %v244 = vpop.xlane.xlu0 %243
  %v245 = vsel %vm47, %v215, 0.0
  %246 = vadd.xlane.f32.xlu0 %v245
  %v247 = vpop.xlane.xlu0 %246
  %v248 = vsel %vm47, %v216, 0.0
  %249 = vadd.xlane.f32.xlu0 %v248
  %v250 = vpop.xlane.xlu0 %249
  %v251 = vsel %vm47, %v217, 0.0
  %252 = vadd.xlane.f32.xlu0 %v251
  %v253 = vpop.xlane.xlu0 %252
  %v254 = vsel %vm47, %v218, 0.0
  %255 = vadd.xlane.f32.xlu0 %v254
  %v256 = vpop.xlane.xlu0 %255
  %v257 = vsel %vm47, %v219, 0.0
  %258 = vadd.xlane.f32.xlu0 %v257
  %v259 = vpop.xlane.xlu0 %258
  %v260 = vsel %vm47, %v220, 0.0
  %261 = vadd.xlane.f32.xlu0 %v260
  %v262 = vpop.xlane.xlu0 %261
  %v263 = vsel %vm47, %v221, 0.0
  %264 = vadd.xlane.f32.xlu0 %v263
  %v265 = vpop.xlane.xlu0 %264
  %v266 = vsel %vm47, %v222, 0.0
  %267 = vadd.xlane.f32.xlu0 %v266
  %v268 = vpop.xlane.xlu0 %267
  %v269 = vsel %vm47, %v223, 0.0
  %270 = vadd.xlane.f32.xlu0 %v269
  %v271 = vpop.xlane.xlu0 %270
  %v272 = vmul.f32 %v192, %v192
  %v273 = vmul.f32 %v193, %v193
  %v274 = vmul.f32 %v194, %v194
  %v275 = vmul.f32 %v195, %v195
  %v276 = vmul.f32 %v196, %v196
  %v277 = vmul.f32 %v197, %v197
  %v278 = vmul.f32 %v198, %v198
  %v279 = vmul.f32 %v199, %v199
  %v280 = vmul.f32 %v200, %v200
  %v281 = vmul.f32 %v201, %v201
  %v282 = vmul.f32 %v202, %v202
  %v283 = vmul.f32 %v203, %v203
  %v284 = vmul.f32 %v204, %v204
  %v285 = vmul.f32 %v205, %v205
  %v286 = vmul.f32 %v206, %v206
  %v287 = vmul.f32 %v207, %v207
  %v288 = vsel %vm47, %v272, 0.0
  %289 = vadd.xlane.f32.xlu0 %v288
  %v290 = vpop.xlane.xlu0 %289
  %v291 = vsel %vm47, %v273, 0.0
  %292 = vadd.xlane.f32.xlu0 %v291
  %v293 = vpop.xlane.xlu0 %292
  %v294 = vsel %vm47, %v274, 0.0
  %295 = vadd.xlane.f32.xlu0 %v294
  %v296 = vpop.xlane.xlu0 %295
  %v297 = vsel %vm47, %v275, 0.0
  %298 = vadd.xlane.f32.xlu0 %v297
  %v299 = vpop.xlane.xlu0 %298
  %v300 = vsel %vm47, %v276, 0.0
  %301 = vadd.xlane.f32.xlu0 %v300
  %v302 = vpop.xlane.xlu0 %301
  %v303 = vsel %vm47, %v277, 0.0
  %304 = vadd.xlane.f32.xlu0 %v303
  %v305 = vpop.xlane.xlu0 %304
  %v306 = vsel %vm47, %v278, 0.0
  %307 = vadd.xlane.f32.xlu0 %v306
  %v308 = vpop.xlane.xlu0 %307
  %v309 = vsel %vm47, %v279, 0.0
  %310 = vadd.xlane.f32.xlu0 %v309
  %v311 = vpop.xlane.xlu0 %310
  %v312 = vsel %vm47, %v280, 0.0
  %313 = vadd.xlane.f32.xlu0 %v312
  %v314 = vpop.xlane.xlu0 %313
  %v315 = vsel %vm47, %v281, 0.0
  %316 = vadd.xlane.f32.xlu0 %v315
  %v317 = vpop.xlane.xlu0 %316
  %v318 = vsel %vm47, %v282, 0.0
  %319 = vadd.xlane.f32.xlu0 %v318
  %v320 = vpop.xlane.xlu0 %319
  %v321 = vsel %vm47, %v283, 0.0
  %322 = vadd.xlane.f32.xlu0 %v321
  %v323 = vpop.xlane.xlu0 %322
  %v324 = vsel %vm47, %v284, 0.0
  %325 = vadd.xlane.f32.xlu0 %v324
  %v326 = vpop.xlane.xlu0 %325
  %v327 = vsel %vm47, %v285, 0.0
  %328 = vadd.xlane.f32.xlu0 %v327
  %v329 = vpop.xlane.xlu0 %328
  %v330 = vsel %vm47, %v286, 0.0
  %331 = vadd.xlane.f32.xlu0 %v330
  %v332 = vpop.xlane.xlu0 %331
  %v333 = vsel %vm47, %v287, 0.0
  %334 = vadd.xlane.f32.xlu0 %v333
  %v335 = vpop.xlane.xlu0 %334
  %v336 = vadd.f32 %v226, %v290
  %v337 = vadd.f32 %v229, %v293
  %v338 = vadd.f32 %v232, %v296
  %v339 = vadd.f32 %v235, %v299
  %v340 = vadd.f32 %v238, %v302
  %v341 = vadd.f32 %v241, %v305
  %v342 = vadd.f32 %v244, %v308
  %v343 = vadd.f32 %v247, %v311
  %v344 = vadd.f32 %v250, %v314
  %v345 = vadd.f32 %v253, %v317
  %v346 = vadd.f32 %v256, %v320
  %v347 = vadd.f32 %v259, %v323
  %v348 = vadd.f32 %v262, %v326
  %v349 = vadd.f32 %v265, %v329
  %v350 = vadd.f32 %v268, %v332
  %v351 = vadd.f32 %v271, %v335
  %v352 = vmul.f32 %v336, 0.0625
  %v353 = vmul.f32 %v337, 0.0625
  %v354 = vmul.f32 %v338, 0.0625
  %v355 = vmul.f32 %v339, 0.0625
  %v356 = vmul.f32 %v340, 0.0625
  %v357 = vmul.f32 %v341, 0.0625
  %v358 = vmul.f32 %v342, 0.0625
  %v359 = vmul.f32 %v343, 0.0625
  %v360 = vmul.f32 %v344, 0.0625
  %v361 = vmul.f32 %v345, 0.0625
  %v362 = vmul.f32 %v346, 0.0625
  %v363 = vmul.f32 %v347, 0.0625
  %v364 = vmul.f32 %v348, 0.0625
  %v365 = vmul.f32 %v349, 0.0625
  %v366 = vmul.f32 %v350, 0.0625
  %v367 = vmul.f32 %v351, 0.0625
  %v368 = vadd.f32 %v352, 1e-05
  %v369 = vadd.f32 %v353, 1e-05
  %v370 = vadd.f32 %v354, 1e-05
  %v371 = vadd.f32 %v355, 1e-05
  %v372 = vadd.f32 %v356, 1e-05
  %v373 = vadd.f32 %v357, 1e-05
  %v374 = vadd.f32 %v358, 1e-05
  %v375 = vadd.f32 %v359, 1e-05
  %v376 = vadd.f32 %v360, 1e-05
  %v377 = vadd.f32 %v361, 1e-05
  %v378 = vadd.f32 %v362, 1e-05
  %v379 = vadd.f32 %v363, 1e-05
  %v380 = vadd.f32 %v364, 1e-05
  %v381 = vadd.f32 %v365, 1e-05
  %v382 = vadd.f32 %v366, 1e-05
  %v383 = vadd.f32 %v367, 1e-05
  %v384 = vrsqrt.pop %v368
  %v385 = vmul.f32 %v384, %v368
  %v386 = vmul.f32 %v385, %v384
  %v387 = vmul.f32 0.5, %v386
  %v388 = vsub.f32 1.5, %v387
  %v389 = vmul.f32 %v384, %v388
  %vm390 = vweird.f32 %v368
  %vm391 = vweird.f32 %v384
  %vm392 = vmor %vm390, %vm391
  %v393 = vsel %vm392, %v384, %v389
  %v394 = vrsqrt.pop %v369
  %v395 = vmul.f32 %v394, %v369
  %v396 = vmul.f32 %v395, %v394
  %v397 = vmul.f32 0.5, %v396
  %v398 = vsub.f32 1.5, %v397
  %v399 = vmul.f32 %v394, %v398
  %vm400 = vweird.f32 %v369
  %vm401 = vweird.f32 %v394
  %vm402 = vmor %vm400, %vm401
  %v403 = vsel %vm402, %v394, %v399
  %v404 = vrsqrt.pop %v370
  %v405 = vmul.f32 %v404, %v370
  %v406 = vmul.f32 %v405, %v404
  %v407 = vmul.f32 0.5, %v406
  %v408 = vsub.f32 1.5, %v407
  %v409 = vmul.f32 %v404, %v408
  %vm410 = vweird.f32 %v370
  %vm411 = vweird.f32 %v404
  %vm412 = vmor %vm410, %vm411
  %v413 = vsel %vm412, %v404, %v409
  %v414 = vrsqrt.pop %v371
  %v415 = vmul.f32 %v414, %v371
  %v416 = vmul.f32 %v415, %v414
  %v417 = vmul.f32 0.5, %v416
  %v418 = vsub.f32 1.5, %v417
  %v419 = vmul.f32 %v414, %v418
  %vm420 = vweird.f32 %v371
  %vm421 = vweird.f32 %v414
  %vm422 = vmor %vm420, %vm421
  %v423 = vsel %vm422, %v414, %v419
  %v424 = vrsqrt.pop %v372
  %v425 = vmul.f32 %v424, %v372
  %v426 = vmul.f32 %v425, %v424
  %v427 = vmul.f32 0.5, %v426
  %v428 = vsub.f32 1.5, %v427
  %v429 = vmul.f32 %v424, %v428
  %vm430 = vweird.f32 %v372
  %vm431 = vweird.f32 %v424
  %vm432 = vmor %vm430, %vm431
  %v433 = vsel %vm432, %v424, %v429
  %v434 = vrsqrt.pop %v373
  %v435 = vmul.f32 %v434, %v373
  %v436 = vmul.f32 %v435, %v434
  %v437 = vmul.f32 0.5, %v436
  %v438 = vsub.f32 1.5, %v437
  %v439 = vmul.f32 %v434, %v438
  %vm440 = vweird.f32 %v373
  %vm441 = vweird.f32 %v434
  %vm442 = vmor %vm440, %vm441
  %v443 = vsel %vm442, %v434, %v439
  %v444 = vrsqrt.pop %v374
  %v445 = vmul.f32 %v444, %v374
  %v446 = vmul.f32 %v445, %v444
  %v447 = vmul.f32 0.5, %v446
  %v448 = vsub.f32 1.5, %v447
  %v449 = vmul.f32 %v444, %v448
  %vm450 = vweird.f32 %v374
  %vm451 = vweird.f32 %v444
  %vm452 = vmor %vm450, %vm451
  %v453 = vsel %vm452, %v444, %v449
  %v454 = vrsqrt.pop %v375
  %v455 = vmul.f32 %v454, %v375
  %v456 = vmul.f32 %v455, %v454
  %v457 = vmul.f32 0.5, %v456
  %v458 = vsub.f32 1.5, %v457
  %v459 = vmul.f32 %v454, %v458
  %vm460 = vweird.f32 %v375
  %vm461 = vweird.f32 %v454
  %vm462 = vmor %vm460, %vm461
  %v463 = vsel %vm462, %v454, %v459
  %v464 = vrsqrt.pop %v376
  %v465 = vmul.f32 %v464, %v376
  %v466 = vmul.f32 %v465, %v464
  %v467 = vmul.f32 0.5, %v466
  %v468 = vsub.f32 1.5, %v467
  %v469 = vmul.f32 %v464, %v468
  %vm470 = vweird.f32 %v376
  %vm471 = vweird.f32 %v464
  %vm472 = vmor %vm470, %vm471
  %v473 = vsel %vm472, %v464, %v469
  %v474 = vrsqrt.pop %v377
  %v475 = vmul.f32 %v474, %v377
  %v476 = vmul.f32 %v475, %v474
  %v477 = vmul.f32 0.5, %v476
  %v478 = vsub.f32 1.5, %v477
  %v479 = vmul.f32 %v474, %v478
  %vm480 = vweird.f32 %v377
  %vm481 = vweird.f32 %v474
  %vm482 = vmor %vm480, %vm481
  %v483 = vsel %vm482, %v474, %v479
  %v484 = vrsqrt.pop %v378
  %v485 = vmul.f32 %v484, %v378
  %v486 = vmul.f32 %v485, %v484
  %v487 = vmul.f32 0.5, %v486
  %v488 = vsub.f32 1.5, %v487
  %v489 = vmul.f32 %v484, %v488
  %vm490 = vweird.f32 %v378
  %vm491 = vweird.f32 %v484
  %vm492 = vmor %vm490, %vm491
  %v493 = vsel %vm492, %v484, %v489
  %v494 = vrsqrt.pop %v379
  %v495 = vmul.f32 %v494, %v379
  %v496 = vmul.f32 %v495, %v494
  %v497 = vmul.f32 0.5, %v496
  %v498 = vsub.f32 1.5, %v497
  %v499 = vmul.f32 %v494, %v498
  %vm500 = vweird.f32 %v379
  %vm501 = vweird.f32 %v494
  %vm502 = vmor %vm500, %vm501
  %v503 = vsel %vm502, %v494, %v499
  %v504 = vrsqrt.pop %v380
  %v505 = vmul.f32 %v504, %v380
  %v506 = vmul.f32 %v505, %v504
  %v507 = vmul.f32 0.5, %v506
  %v508 = vsub.f32 1.5, %v507
  %v509 = vmul.f32 %v504, %v508
  %vm510 = vweird.f32 %v380
  %vm511 = vweird.f32 %v504
  %vm512 = vmor %vm510, %vm511
  %v513 = vsel %vm512, %v504, %v509
  %v514 = vrsqrt.pop %v381
  %v515 = vmul.f32 %v514, %v381
  %v516 = vmul.f32 %v515, %v514
  %v517 = vmul.f32 0.5, %v516
  %v518 = vsub.f32 1.5, %v517
  %v519 = vmul.f32 %v514, %v518
  %vm520 = vweird.f32 %v381
  %vm521 = vweird.f32 %v514
  %vm522 = vmor %vm520, %vm521
  %v523 = vsel %vm522, %v514, %v519
  %v524 = vrsqrt.pop %v382
  %v525 = vmul.f32 %v524, %v382
  %v526 = vmul.f32 %v525, %v524
  %v527 = vmul.f32 0.5, %v526
  %v528 = vsub.f32 1.5, %v527
  %v529 = vmul.f32 %v524, %v528
  %vm530 = vweird.f32 %v382
  %vm531 = vweird.f32 %v524
  %vm532 = vmor %vm530, %vm531
  %v533 = vsel %vm532, %v524, %v529
  %v534 = vrsqrt.pop %v383
  %v535 = vmul.f32 %v534, %v383
  %v536 = vmul.f32 %v535, %v534
  %v537 = vmul.f32 0.5, %v536
  %v538 = vsub.f32 1.5, %v537
  %v539 = vmul.f32 %v534, %v538
  %vm540 = vweird.f32 %v383
  %vm541 = vweird.f32 %v534
  %vm542 = vmor %vm540, %vm541
  %v543 = vsel %vm542, %v534, %v539
  %v544 = vmul.f32 %v176, %v393
  %v545 = vmul.f32 %v177, %v403
  %v546 = vmul.f32 %v178, %v413
  %v547 = vmul.f32 %v179, %v423
  %v548 = vmul.f32 %v180, %v433
  %v549 = vmul.f32 %v181, %v443
  %v550 = vmul.f32 %v182, %v453
  %v551 = vmul.f32 %v183, %v463
  %v552 = vmul.f32 %v184, %v473
  %v553 = vmul.f32 %v185, %v483
  %v554 = vmul.f32 %v186, %v493
  %v555 = vmul.f32 %v187, %v503
  %v556 = vmul.f32 %v188, %v513
  %v557 = vmul.f32 %v189, %v523
  %v558 = vmul.f32 %v190, %v533
  %v559 = vmul.f32 %v191, %v543
  %v560 = vmul.f32 %v192, %v393
  %v561 = vmul.f32 %v193, %v403
  %v562 = vmul.f32 %v194, %v413
  %v563 = vmul.f32 %v195, %v423
  %v564 = vmul.f32 %v196, %v433
  %v565 = vmul.f32 %v197, %v443
  %v566 = vmul.f32 %v198, %v453
  %v567 = vmul.f32 %v199, %v463
  %v568 = vmul.f32 %v200, %v473
  %v569 = vmul.f32 %v201, %v483
  %v570 = vmul.f32 %v202, %v493
  %v571 = vmul.f32 %v203, %v503
  %v572 = vmul.f32 %v204, %v513
  %v573 = vmul.f32 %v205, %v523
  %v574 = vmul.f32 %v206, %v533
  %v575 = vmul.f32 %v207, %v543
  %v576 = vld [vmem:[%s1] sm:$0xff]
  %v577 = vld [vmem:[%s1 + $0x8] sm:$0xff]
  %v579 = vsel %vm47, %v560, 0
  %v582 = vsel %vm47, %v561, 0
  %v585 = vsel %vm47, %v562, 0
  %v588 = vsel %vm47, %v563, 0
  %v591 = vsel %vm47, %v564, 0
  %v594 = vsel %vm47, %v565, 0
  %v597 = vsel %vm47, %v566, 0
  %v600 = vsel %vm47, %v567, 0
  %v603 = vsel %vm47, %v568, 0
  %v606 = vsel %vm47, %v569, 0
  %v609 = vsel %vm47, %v570, 0
  %v612 = vsel %vm47, %v571, 0
  %v615 = vsel %vm47, %v572, 0
  %v618 = vsel %vm47, %v573, 0
  %v621 = vsel %vm47, %v574, 0
  %v624 = vsel %vm47, %v575, 0
  %626 = vmatpush.msra.mxu0 0.0
  %627 = vmatpush.msra.mxu0 0.0
  %628 = vmatpush.msra.mxu0 0.0
  %629 = vmatpush.msra.mxu0 0.0
  %630 = vmatpush.msra.mxu0 0.0
  %631 = vmatpush.msra.mxu0 0.0
  %632 = vmatpush.msra.mxu0 0.0
  %633 = vmatpush.msra.mxu0 0.0
  %634 = vmatpush.msra.mxu0 0.0
  %635 = vmatpush.msra.mxu0 0.0
  %636 = vmatpush.msra.mxu0 0.0
  %637 = vmatpush.msra.mxu0 0.0
  %638 = vmatpush.msra.mxu0 0.0
  %639 = vmatpush.msra.mxu0 0.0
  %640 = vmatpush.msra.mxu0 0.0
  %641 = vmatpush.msra.mxu0 %v577
  %642 = vmatmul.f32.gmra.mxu0 %v579
  %v643 = vpop.f32.mrf.mxu0
  %v644 = vadd.f32 0.0, %v643
  %645 = vmatmul.f32.gmra.mxu0 %v582
  %v646 = vpop.f32.mrf.mxu0
  %v647 = vadd.f32 0.0, %v646
  %648 = vmatmul.f32.gmra.mxu0 %v585
  %v649 = vpop.f32.mrf.mxu0
  %v650 = vadd.f32 0.0, %v649
  %651 = vmatmul.f32.gmra.mxu0 %v588
  %v652 = vpop.f32.mrf.mxu0
  %v653 = vadd.f32 0.0, %v652
  %654 = vmatmul.f32.gmra.mxu0 %v591
  %v655 = vpop.f32.mrf.mxu0
  %v656 = vadd.f32 0.0, %v655
  %657 = vmatmul.f32.gmra.mxu0 %v594
  %v658 = vpop.f32.mrf.mxu0
  %v659 = vadd.f32 0.0, %v658
  %660 = vmatmul.f32.gmra.mxu0 %v597
  %v661 = vpop.f32.mrf.mxu0
  %v662 = vadd.f32 0.0, %v661
  %663 = vmatmul.f32.gmra.mxu0 %v600
  %v664 = vpop.f32.mrf.mxu0
  %v665 = vadd.f32 0.0, %v664
  %666 = vmatmul.f32.gmra.mxu0 %v603
  %v667 = vpop.f32.mrf.mxu0
  %v668 = vadd.f32 0.0, %v667
  %669 = vmatmul.f32.gmra.mxu0 %v606
  %v670 = vpop.f32.mrf.mxu0
  %v671 = vadd.f32 0.0, %v670
  %672 = vmatmul.f32.gmra.mxu0 %v609
  %v673 = vpop.f32.mrf.mxu0
  %v674 = vadd.f32 0.0, %v673
  %675 = vmatmul.f32.gmra.mxu0 %v612
  %v676 = vpop.f32.mrf.mxu0
  %v677 = vadd.f32 0.0, %v676
  %678 = vmatmul.f32.gmra.mxu0 %v615
  %v679 = vpop.f32.mrf.mxu0
  %v680 = vadd.f32 0.0, %v679
  %681 = vmatmul.f32.gmra.mxu0 %v618
  %v682 = vpop.f32.mrf.mxu0
  %v683 = vadd.f32 0.0, %v682
  %684 = vmatmul.f32.gmra.mxu0 %v621
  %v685 = vpop.f32.mrf.mxu0
  %v686 = vadd.f32 0.0, %v685
  %687 = vmatmul.f32.gmra.mxu0 %v624
  %v688 = vpop.f32.mrf.mxu0
  %v689 = vadd.f32 0.0, %v688
  %690 = vdwg.mxu0
  %v692 = vsel %vm47, %v544, 0
  %v695 = vsel %vm47, %v545, 0
  %v698 = vsel %vm47, %v546, 0
  %v701 = vsel %vm47, %v547, 0
  %v704 = vsel %vm47, %v548, 0
  %v707 = vsel %vm47, %v549, 0
  %v710 = vsel %vm47, %v550, 0
  %v713 = vsel %vm47, %v551, 0
  %v716 = vsel %vm47, %v552, 0
  %v719 = vsel %vm47, %v553, 0
  %v722 = vsel %vm47, %v554, 0
  %v725 = vsel %vm47, %v555, 0
  %v728 = vsel %vm47, %v556, 0
  %v731 = vsel %vm47, %v557, 0
  %v734 = vsel %vm47, %v558, 0
  %v737 = vsel %vm47, %v559, 0
  %739 = vmatpush.msra.mxu0 0.0
  %740 = vmatpush.msra.mxu0 0.0
  %741 = vmatpush.msra.mxu0 0.0
  %742 = vmatpush.msra.mxu0 0.0
  %743 = vmatpush.msra.mxu0 0.0
  %744 = vmatpush.msra.mxu0 0.0
  %745 = vmatpush.msra.mxu0 0.0
  %746 = vmatpush.msra.mxu0 0.0
  %747 = vmatpush.msra.mxu0 0.0
  %748 = vmatpush.msra.mxu0 0.0
  %749 = vmatpush.msra.mxu0 0.0
  %750 = vmatpush.msra.mxu0 0.0
  %751 = vmatpush.msra.mxu0 0.0
  %752 = vmatpush.msra.mxu0 0.0
  %753 = vmatpush.msra.mxu0 0.0
  %754 = vmatpush.msra.mxu0 %v576
  %755 = vmatmul.f32.gmra.mxu0 %v692
  %v756 = vpop.f32.mrf.mxu0
  %v757 = vadd.f32 %v644, %v756
  %758 = vmatmul.f32.gmra.mxu0 %v695
  %v759 = vpop.f32.mrf.mxu0
  %v760 = vadd.f32 %v647, %v759
  %761 = vmatmul.f32.gmra.mxu0 %v698
  %v762 = vpop.f32.mrf.mxu0
  %v763 = vadd.f32 %v650, %v762
  %764 = vmatmul.f32.gmra.mxu0 %v701
  %v765 = vpop.f32.mrf.mxu0
  %v766 = vadd.f32 %v653, %v765
  %767 = vmatmul.f32.gmra.mxu0 %v704
  %v768 = vpop.f32.mrf.mxu0
  %v769 = vadd.f32 %v656, %v768
  %770 = vmatmul.f32.gmra.mxu0 %v707
  %v771 = vpop.f32.mrf.mxu0
  %v772 = vadd.f32 %v659, %v771
  %773 = vmatmul.f32.gmra.mxu0 %v710
  %v774 = vpop.f32.mrf.mxu0
  %v775 = vadd.f32 %v662, %v774
  %776 = vmatmul.f32.gmra.mxu0 %v713
  %v777 = vpop.f32.mrf.mxu0
  %v778 = vadd.f32 %v665, %v777
  %779 = vmatmul.f32.gmra.mxu0 %v716
  %v780 = vpop.f32.mrf.mxu0
  %v781 = vadd.f32 %v668, %v780
  %782 = vmatmul.f32.gmra.mxu0 %v719
  %v783 = vpop.f32.mrf.mxu0
  %v784 = vadd.f32 %v671, %v783
  %785 = vmatmul.f32.gmra.mxu0 %v722
  %v786 = vpop.f32.mrf.mxu0
  %v787 = vadd.f32 %v674, %v786
  %788 = vmatmul.f32.gmra.mxu0 %v725
  %v789 = vpop.f32.mrf.mxu0
  %v790 = vadd.f32 %v677, %v789
  %791 = vmatmul.f32.gmra.mxu0 %v728
  %v792 = vpop.f32.mrf.mxu0
  %v793 = vadd.f32 %v680, %v792
  %794 = vmatmul.f32.gmra.mxu0 %v731
  %v795 = vpop.f32.mrf.mxu0
  %v796 = vadd.f32 %v683, %v795
  %797 = vmatmul.f32.gmra.mxu0 %v734
  %v798 = vpop.f32.mrf.mxu0
  %v799 = vadd.f32 %v686, %v798
  %800 = vmatmul.f32.gmra.mxu0 %v737
  %v801 = vpop.f32.mrf.mxu0
  %v802 = vadd.f32 %v689, %v801
  %803 = vdwg.mxu0
  %v804 = vld [vmem:[%s2] sm:$0x1]
  %v806 = vperm.slane %v804, 0
  %v808 = vadd.f32 %v757, %v806
  %v809 = vadd.f32 %v760, %v806
  %v810 = vadd.f32 %v763, %v806
  %v811 = vadd.f32 %v766, %v806
  %v812 = vadd.f32 %v769, %v806
  %v813 = vadd.f32 %v772, %v806
  %v814 = vadd.f32 %v775, %v806
  %v815 = vadd.f32 %v778, %v806
  %v816 = vadd.f32 %v781, %v806
  %v817 = vadd.f32 %v784, %v806
  %v818 = vadd.f32 %v787, %v806
  %v819 = vadd.f32 %v790, %v806
  %v820 = vadd.f32 %v793, %v806
  %v821 = vadd.f32 %v796, %v806
  %v822 = vadd.f32 %v799, %v806
  %v823 = vadd.f32 %v802, %v806
  %824 = vst.msk [vmem:[%s3] sm:$0xff] %vm47, %v808
  %825 = vst.msk [vmem:[%s3 + $0x8] sm:$0xff] %vm47, %v809
  %826 = vst.msk [vmem:[%s3 + $0x10] sm:$0xff] %vm47, %v810
  %827 = vst.msk [vmem:[%s3 + $0x18] sm:$0xff] %vm47, %v811
  %828 = vst.msk [vmem:[%s3 + $0x20] sm:$0xff] %vm47, %v812
  %829 = vst.msk [vmem:[%s3 + $0x28] sm:$0xff] %vm47, %v813
  %830 = vst.msk [vmem:[%s3 + $0x30] sm:$0xff] %vm47, %v814
  %831 = vst.msk [vmem:[%s3 + $0x38] sm:$0xff] %vm47, %v815
  %832 = vst.msk [vmem:[%s3 + $0x40] sm:$0xff] %vm47, %v816
  %833 = vst.msk [vmem:[%s3 + $0x48] sm:$0xff] %vm47, %v817
  %834 = vst.msk [vmem:[%s3 + $0x50] sm:$0xff] %vm47, %v818
  %835 = vst.msk [vmem:[%s3 + $0x58] sm:$0xff] %vm47, %v819
  %836 = vst.msk [vmem:[%s3 + $0x60] sm:$0xff] %vm47, %v820
  %837 = vst.msk [vmem:[%s3 + $0x68] sm:$0xff] %vm47, %v821
  %838 = vst.msk [vmem:[%s3 + $0x70] sm:$0xff] %vm47, %v822
  %839 = vst.msk [vmem:[%s3 + $0x78] sm:$0xff] %vm47, %v823
  // Predicated region
  $region14: #{tpu_custom_call.1} parent=0 // pred_check
    _
  $region15: #{tpu_custom_call.1} parent=0 // pred_check_branch
    %841 = sbr.rel (0) target = $region17
  $region16: #{tpu_custom_call.1} parent=0 // pred_region
    _
  $region17: #{tpu_custom_call.1} parent=0 // pred_fallthru
    _
  // Predicated region
  $region18: #{tpu_custom_call.1} parent=0 // pred_check
    _
  $region19: #{tpu_custom_call.1} parent=0 // pred_check_branch
    %843 = sbr.rel (0) target = $region21
  $region20: #{tpu_custom_call.1} parent=0 // pred_region
    _
  $region21: #{tpu_custom_call.1} parent=0 // pred_fallthru
    _

</llo_original>
